<compile_context>
chip_gen: v7x
topology: tpu7x:2x2x1
jax: 0.10.0
libtpu: 0.0.40
codegen_flags: <defaults>
</compile_context>

<pallas_src>
import functools

import jax
import jax.numpy as jnp
from jax.experimental import pallas as pl
from jax.experimental.pallas import tpu as pltpu

HIDDEN = 64          # fc / fc_gate / bn / fc_out width in the module
FUSED = 2 * HIDDEN   # fc + fc_gate fused along the output dim -> 128 lanes
OUT_PAD = 128        # fc_out output padded 64 -> 128 for lane-dense stores
BN_EPS = 1e-5
LANE = 128
SUBLANE = 8


def _round_up(v, m):
    return (v + m - 1) // m * m


def _choose_tile_b(batch, f_pad):
    """Batch tile sized against a conservative (v7x-safe) VMEM budget."""
    # double-buffered x tile + output tile + fused intermediate, all f32
    bytes_per_row = 4 * (2 * f_pad + 2 * OUT_PAD + FUSED)
    budget = 24 * 1024 * 1024
    t = max(SUBLANE, (budget // bytes_per_row) // SUBLANE * SUBLANE)
    t = min(t, 2048, _round_up(batch, SUBLANE))
    return max(SUBLANE, t)


def _feature_transformer_kernel(
    x_ref,        # (TILE_B, F_pad)
    wfused_ref,   # (F_pad, 128)  [fc.weight^T | fc_gate.weight^T]
    bfused_ref,   # (1, 128)      [fc.bias | fc_gate.bias]
    gamma_ref,    # (1, 64)       bn.weight
    beta_ref,     # (1, 64)       bn.bias
    wout_ref,     # (64, 128)     fc_out.weight^T zero-padded to 128 cols
    bout_ref,     # (1, 128)      fc_out.bias zero-padded
    o_ref,        # (TILE_B, 128)
    sum_ref,      # (1, 64) VMEM scratch: running sum(z)
    sumsq_ref,    # (1, 64) VMEM scratch: running sum(z*z)
    *, batch, tile_b,
):
    p = pl.program_id(0)   # 0: accumulate BN statistics, 1: normalize + fc_out
    t = pl.program_id(1)   # batch-tile index

    # Fused fc + fc_gate: one 128-wide MXU matmul instead of two 64-wide ones.
    x = x_ref[...]
    hg = (jnp.dot(x, wfused_ref[...], preferred_element_type=jnp.float32)
          + bfused_ref[...])
    h = hg[:, :HIDDEN]
    gate = jax.nn.sigmoid(hg[:, HIDDEN:])
    z = h * gate

    @pl.when((p == 0) & (t == 0))
    def _init():
        sum_ref[...] = jnp.zeros_like(sum_ref)
        sumsq_ref[...] = jnp.zeros_like(sumsq_ref)

    @pl.when(p == 0)
    def _stats():
        # Mask rows that belong to batch padding so they don't pollute stats.
        row = t * tile_b + jax.lax.broadcasted_iota(jnp.int32, z.shape, 0)
        zm = jnp.where(row < batch, z, 0.0)
        sum_ref[...] += jnp.sum(zm, axis=0, keepdims=True)
        sumsq_ref[...] += jnp.sum(zm * zm, axis=0, keepdims=True)
        # Output block is written back every grid step; keep it defined here
        # (pass 1 overwrites it with the real result).
        o_ref[...] = jnp.zeros_like(o_ref)

    @pl.when(p == 1)
    def _finalize():
        inv_n = jnp.float32(1.0 / batch)
        mean = sum_ref[...] * inv_n
        var = sumsq_ref[...] * inv_n - mean * mean   # biased batch variance
        z_norm = (z - mean) * jax.lax.rsqrt(var + BN_EPS)
        y = jnp.maximum(z_norm * gamma_ref[...] + beta_ref[...], 0.0)
        o_ref[...] = (jnp.dot(y, wout_ref[...],
                              preferred_element_type=jnp.float32)
                      + bout_ref[...])


def feature_transformer(x, params, tile_b=None):
    """x: (B, F) float32. params: PyTorch-layout weights (pre-transposed)."""
    batch, feat = x.shape
    f_pad = _round_up(feat, LANE)
    tile_b = tile_b or _choose_tile_b(batch, f_pad)
    b_pad = _round_up(batch, tile_b)
    nt = b_pad // tile_b

    # ---- layout prep: fuse fc|fc_gate, pad to lane-dense shapes ----
    w_fused = jnp.concatenate([params["wfc_t"], params["wg_t"]], axis=1)  # (F,128)
    b_fused = jnp.concatenate([params["bfc"], params["bg"]]).reshape(1, FUSED)
    if f_pad != feat:
        w_fused = jnp.pad(w_fused, ((0, f_pad - feat), (0, 0)))
    wout = jnp.pad(params["wout_t"], ((0, 0), (0, OUT_PAD - HIDDEN)))     # (64,128)
    bout = jnp.pad(params["bout"], (0, OUT_PAD - HIDDEN)).reshape(1, OUT_PAD)
    gamma = params["gamma"].reshape(1, HIDDEN)
    beta = params["beta"].reshape(1, HIDDEN)
    xp = x
    if b_pad != batch or f_pad != feat:
        xp = jnp.pad(x, ((0, b_pad - batch), (0, f_pad - feat)))

    kernel = functools.partial(_feature_transformer_kernel,
                               batch=batch, tile_b=tile_b)

    resident = lambda p, t: (0, 0)   # weights: DMA'd once, stay VMEM-resident
    tiled = lambda p, t: (t, 0)      # x / out: pipelined over batch tiles

    out = pl.pallas_call(
        kernel,
        out_shape=jax.ShapeDtypeStruct((b_pad, OUT_PAD), jnp.float32),
        grid_spec=pltpu.PrefetchScalarGridSpec(
            num_scalar_prefetch=0,
            grid=(2, nt),   # (pass, batch tile); pass is the outer axis
            in_specs=[
                pl.BlockSpec((tile_b, f_pad), tiled),        # x
                pl.BlockSpec((f_pad, FUSED), resident),      # fused fc|fc_gate W
                pl.BlockSpec((1, FUSED), resident),          # fused bias
                pl.BlockSpec((1, HIDDEN), resident),         # bn gamma
                pl.BlockSpec((1, HIDDEN), resident),         # bn beta
                pl.BlockSpec((HIDDEN, OUT_PAD), resident),   # fc_out W (padded)
                pl.BlockSpec((1, OUT_PAD), resident),        # fc_out b (padded)
            ],
            out_specs=pl.BlockSpec((tile_b, OUT_PAD), tiled),
            scratch_shapes=[pltpu.VMEM((1, HIDDEN), jnp.float32),   # sum(z)
                            pltpu.VMEM((1, HIDDEN), jnp.float32)],  # sum(z^2)
        ),
        compiler_params=pltpu.CompilerParams(
            # Both axes are global reductions / ordered (BN stats shared across
            # all batch tiles and both passes), so keep them sequential.
            dimension_semantics=("arbitrary", "arbitrary")),
    )(xp, w_fused, b_fused, gamma, beta, wout, bout)

    return out[:batch, :HIDDEN]


def init_params(key, num_features):
    """Deterministic synthetic parameters (shapes match the nn.Module)."""
    ks = jax.random.split(key, 6)
    # PyTorch stores Linear weights as (out, in); keep the transposed form.
    wfc = jax.random.normal(ks[0], (HIDDEN, num_features), jnp.float32) * 0.1
    bfc = jax.random.normal(ks[1], (HIDDEN,), jnp.float32) * 0.1
    wg = jax.random.normal(ks[2], (HIDDEN, num_features), jnp.float32) * 0.1
    bg = jax.random.normal(ks[3], (HIDDEN,), jnp.float32) * 0.1
    wout = jax.random.normal(ks[4], (HIDDEN, HIDDEN), jnp.float32) * 0.1
    bout = jax.random.normal(ks[5], (HIDDEN,), jnp.float32) * 0.1
    return {
        "wfc_t": wfc.T, "bfc": bfc,
        "wg_t": wg.T, "bg": bg,
        "gamma": jnp.ones((HIDDEN,), jnp.float32),   # bn.weight init
        "beta": jnp.zeros((HIDDEN,), jnp.float32),   # bn.bias init
        "wout_t": wout.T, "bout": bout,
    }


def feature_transformer_ref(x, p):
    """Pure-JAX reference of the PyTorch forward (train-mode batchnorm)."""
    gate = jax.nn.sigmoid(x @ p["wg_t"] + p["bg"])
    h = x @ p["wfc_t"] + p["bfc"]
    z = h * gate
    mean = jnp.mean(z, axis=0, keepdims=True)
    var = jnp.mean((z - mean) ** 2, axis=0, keepdims=True)
    y = (z - mean) / jnp.sqrt(var + BN_EPS) * p["gamma"] + p["beta"]
    y = jnp.maximum(y, 0.0)
    return y @ p["wout_t"] + p["bout"]


if __name__ == "__main__":
    B, F = 8, 32
    key = jax.random.PRNGKey(0)
    kx, kp = jax.random.split(key)
    x = jax.random.normal(kx, (B, F), jnp.float32)
    params = init_params(kp, F)

    out = feature_transformer(x, params)
    out = jax.block_until_ready(out)

    ref = feature_transformer_ref(x, params)
    assert out.shape == (B, HIDDEN)
    err = jnp.max(jnp.abs(out - ref))
    assert jnp.allclose(out, ref, atol=1e-4, rtol=1e-4), f"max abs err {err}"
    print("KERNEL_OK")
</pallas_src>

<mosaic_0001>
module attributes {stable_mosaic.version = 11 : i64} {
  func.func @_feature_transformer_kernel(%arg0: i32, %arg1: i32, %arg2: memref<8x128xf32, #tpu.memory_space<vmem>>, %arg3: memref<128x128xf32, #tpu.memory_space<vmem>>, %arg4: memref<1x128xf32, #tpu.memory_space<vmem>>, %arg5: memref<1x64xf32, #tpu.memory_space<vmem>>, %arg6: memref<1x64xf32, #tpu.memory_space<vmem>>, %arg7: memref<64x128xf32, #tpu.memory_space<vmem>>, %arg8: memref<1x128xf32, #tpu.memory_space<vmem>>, %arg9: memref<8x128xf32, #tpu.memory_space<vmem>>, %arg10: memref<1x64xf32, #tpu.memory_space<vmem>>, %arg11: memref<1x64xf32, #tpu.memory_space<vmem>>) attributes {dimension_semantics = [#tpu.dimension_semantics<arbitrary>, #tpu.dimension_semantics<arbitrary>], iteration_bounds = array<i64: 2, 1>, scalar_prefetch = 0 : i64, scratch_operands = 2 : i64, tpu.core_type = #tpu.core_type<tc>, window_params = [{transform_indices = @transform_0, window_bounds = array<i64: 8, 128>}, {pipeline_mode = #tpu.pipeline_mode<synchronous>, transform_indices = @transform_1, window_bounds = array<i64: 128, 128>}, {pipeline_mode = #tpu.pipeline_mode<synchronous>, transform_indices = @transform_2, window_bounds = array<i64: 1, 128>}, {pipeline_mode = #tpu.pipeline_mode<synchronous>, transform_indices = @transform_3, window_bounds = array<i64: 1, 64>}, {pipeline_mode = #tpu.pipeline_mode<synchronous>, transform_indices = @transform_4, window_bounds = array<i64: 1, 64>}, {pipeline_mode = #tpu.pipeline_mode<synchronous>, transform_indices = @transform_5, window_bounds = array<i64: 64, 128>}, {pipeline_mode = #tpu.pipeline_mode<synchronous>, transform_indices = @transform_6, window_bounds = array<i64: 1, 128>}, {transform_indices = @transform_7, window_bounds = array<i64: 8, 128>}]} {
    %c0 = arith.constant 0 : index
    %c0_0 = arith.constant 0 : index
    %0 = vector.load %arg2[%c0, %c0_0] : memref<8x128xf32, #tpu.memory_space<vmem>>, vector<8x128xf32>
    %c0_1 = arith.constant 0 : index
    %c0_2 = arith.constant 0 : index
    %1 = vector.load %arg3[%c0_1, %c0_2] : memref<128x128xf32, #tpu.memory_space<vmem>>, vector<128x128xf32>
    %cst = arith.constant dense<0.000000e+00> : vector<8x128xf32>
    %2 = tpu.matmul %0, %1, %cst {dimension_numbers = #tpu.dot_dimension_numbers<[1], [0], [0], [1], [0, 0, 1, 1], [], []>} : vector<8x128xf32>, vector<128x128xf32>, vector<8x128xf32> -> vector<8x128xf32>
    %c0_3 = arith.constant 0 : index
    %c0_4 = arith.constant 0 : index
    %3 = vector.load %arg4[%c0_3, %c0_4] : memref<1x128xf32, #tpu.memory_space<vmem>>, vector<1x128xf32>
    %4 = vector.broadcast %3 : vector<1x128xf32> to vector<8x128xf32>
    %5 = arith.addf %2, %4 : vector<8x128xf32>
    %6 = vector.extract_strided_slice %5 {offsets = [0, 0], sizes = [8, 64], strides = [1, 1]} : vector<8x128xf32> to vector<8x64xf32>
    %7 = vector.extract_strided_slice %5 {offsets = [0, 64], sizes = [8, 64], strides = [1, 1]} : vector<8x128xf32> to vector<8x64xf32>
    %8 = arith.negf %7 : vector<8x64xf32>
    %9 = math.exp %8 : vector<8x64xf32>
    %cst_5 = arith.constant 1.000000e+00 : f32
    %10 = vector.broadcast %cst_5 : f32 to vector<8x64xf32>
    %11 = arith.addf %10, %9 : vector<8x64xf32>
    %12 = arith.divf %10, %11 : vector<8x64xf32>
    %13 = arith.mulf %6, %12 : vector<8x64xf32>
    %c0_i32 = arith.constant 0 : i32
    %14 = arith.cmpi eq, %arg0, %c0_i32 : i32
    %c0_i32_6 = arith.constant 0 : i32
    %15 = arith.cmpi eq, %arg1, %c0_i32_6 : i32
    %16 = arith.andi %14, %15 : i1
    %17 = arith.extui %16 : i1 to i32
    %c0_i32_7 = arith.constant 0 : i32
    %18 = arith.cmpi ne, %17, %c0_i32_7 : i32
    scf.if %18 {
      %cst_11 = arith.constant 0.000000e+00 : f32
      %25 = vector.broadcast %cst_11 : f32 to vector<1x64xf32>
      %c0_12 = arith.constant 0 : index
      %c0_13 = arith.constant 0 : index
      %26 = vector.load %arg10[%c0_12, %c0_13] : memref<1x64xf32, #tpu.memory_space<vmem>>, vector<1x64xf32>
      tpu.vector_store %arg10[%c0_12, %c0_13], %25 {strides = array<i32>} : memref<1x64xf32, #tpu.memory_space<vmem>>, vector<1x64xf32>,
      %cst_14 = arith.constant 0.000000e+00 : f32
      %27 = vector.broadcast %cst_14 : f32 to vector<1x64xf32>
      %c0_15 = arith.constant 0 : index
      %c0_16 = arith.constant 0 : index
      %28 = vector.load %arg11[%c0_15, %c0_16] : memref<1x64xf32, #tpu.memory_space<vmem>>, vector<1x64xf32>
      tpu.vector_store %arg11[%c0_15, %c0_16], %27 {strides = array<i32>} : memref<1x64xf32, #tpu.memory_space<vmem>>, vector<1x64xf32>,
    } else {
    }
    %c0_i32_8 = arith.constant 0 : i32
    %19 = arith.cmpi eq, %arg0, %c0_i32_8 : i32
    %20 = arith.extui %19 : i1 to i32
    %c0_i32_9 = arith.constant 0 : i32
    %21 = arith.cmpi ne, %20, %c0_i32_9 : i32
    scf.if %21 {
      %c8_i32 = arith.constant 8 : i32
      %25 = arith.muli %arg1, %c8_i32 : i32
      %26 = tpu.iota {dimensions = array<i32: 0>} : vector<8x64xi32>
      %27 = vector.broadcast %25 : i32 to vector<8x64xi32>
      %28 = arith.addi %27, %26 : vector<8x64xi32>
      %c8_i32_11 = arith.constant 8 : i32
      %29 = vector.broadcast %c8_i32_11 : i32 to vector<8x64xi32>
      %30 = arith.cmpi slt, %28, %29 : vector<8x64xi32>
      %cst_12 = arith.constant 0.000000e+00 : f32
      %31 = vector.broadcast %cst_12 : f32 to vector<8x64xf32>
      %32 = arith.select %30, %13, %31 : vector<8x64xi1>, vector<8x64xf32>
      %c0_13 = arith.constant 0 : index
      %c0_14 = arith.constant 0 : index
      %33 = vector.load %arg10[%c0_13, %c0_14] : memref<1x64xf32, #tpu.memory_space<vmem>>, vector<1x64xf32>
      %cst_15 = arith.constant dense<0.000000e+00> : vector<64xf32>
      %34 = vector.multi_reduction <add>, %32, %cst_15 [0] : vector<8x64xf32> to vector<64xf32>
      %35 = vector.shape_cast %34 : vector<64xf32> to vector<1x64xf32>
      %36 = arith.addf %33, %35 : vector<1x64xf32>
      %c0_16 = arith.constant 0 : index
      %c0_17 = arith.constant 0 : index
      %37 = vector.load %arg10[%c0_16, %c0_17] : memref<1x64xf32, #tpu.memory_space<vmem>>, vector<1x64xf32>
      tpu.vector_store %arg10[%c0_16, %c0_17], %36 {strides = array<i32>} : memref<1x64xf32, #tpu.memory_space<vmem>>, vector<1x64xf32>,
      %c0_18 = arith.constant 0 : index
      %c0_19 = arith.constant 0 : index
      %38 = vector.load %arg11[%c0_18, %c0_19] : memref<1x64xf32, #tpu.memory_space<vmem>>, vector<1x64xf32>
      %39 = arith.mulf %32, %32 : vector<8x64xf32>
      %cst_20 = arith.constant dense<0.000000e+00> : vector<64xf32>
      %40 = vector.multi_reduction <add>, %39, %cst_20 [0] : vector<8x64xf32> to vector<64xf32>
      %41 = vector.shape_cast %40 : vector<64xf32> to vector<1x64xf32>
      %42 = arith.addf %38, %41 : vector<1x64xf32>
      %c0_21 = arith.constant 0 : index
      %c0_22 = arith.constant 0 : index
      %43 = vector.load %arg11[%c0_21, %c0_22] : memref<1x64xf32, #tpu.memory_space<vmem>>, vector<1x64xf32>
      tpu.vector_store %arg11[%c0_21, %c0_22], %42 {strides = array<i32>} : memref<1x64xf32, #tpu.memory_space<vmem>>, vector<1x64xf32>,
      %cst_23 = arith.constant 0.000000e+00 : f32
      %44 = vector.broadcast %cst_23 : f32 to vector<8x128xf32>
      %c0_24 = arith.constant 0 : index
      %c0_25 = arith.constant 0 : index
      %45 = vector.load %arg9[%c0_24, %c0_25] : memref<8x128xf32, #tpu.memory_space<vmem>>, vector<8x128xf32>
      tpu.vector_store %arg9[%c0_24, %c0_25], %44 {strides = array<i32>} : memref<8x128xf32, #tpu.memory_space<vmem>>, vector<8x128xf32>,
    } else {
    }
    %c1_i32 = arith.constant 1 : i32
    %22 = arith.cmpi eq, %arg0, %c1_i32 : i32
    %23 = arith.extui %22 : i1 to i32
    %c0_i32_10 = arith.constant 0 : i32
    %24 = arith.cmpi ne, %23, %c0_i32_10 : i32
    scf.if %24 {
      %c0_11 = arith.constant 0 : index
      %c0_12 = arith.constant 0 : index
      %25 = vector.load %arg10[%c0_11, %c0_12] : memref<1x64xf32, #tpu.memory_space<vmem>>, vector<1x64xf32>
      %cst_13 = arith.constant 1.250000e-01 : f32
      %26 = vector.broadcast %cst_13 : f32 to vector<1x64xf32>
      %27 = arith.mulf %25, %26 : vector<1x64xf32>
      %c0_14 = arith.constant 0 : index
      %c0_15 = arith.constant 0 : index
      %28 = vector.load %arg11[%c0_14, %c0_15] : memref<1x64xf32, #tpu.memory_space<vmem>>, vector<1x64xf32>
      %cst_16 = arith.constant 1.250000e-01 : f32
      %29 = vector.broadcast %cst_16 : f32 to vector<1x64xf32>
      %30 = arith.mulf %28, %29 : vector<1x64xf32>
      %31 = arith.mulf %27, %27 : vector<1x64xf32>
      %32 = arith.subf %30, %31 : vector<1x64xf32>
      %33 = vector.broadcast %27 : vector<1x64xf32> to vector<8x64xf32>
      %34 = arith.subf %13, %33 : vector<8x64xf32>
      %cst_17 = arith.constant 9.99999974E-6 : f32
      %35 = vector.broadcast %cst_17 : f32 to vector<1x64xf32>
      %36 = arith.addf %32, %35 : vector<1x64xf32>
      %37 = math.rsqrt %36 : vector<1x64xf32>
      %38 = vector.broadcast %37 : vector<1x64xf32> to vector<8x64xf32>
      %39 = arith.mulf %34, %38 : vector<8x64xf32>
      %c0_18 = arith.constant 0 : index
      %c0_19 = arith.constant 0 : index
      %40 = vector.load %arg5[%c0_18, %c0_19] : memref<1x64xf32, #tpu.memory_space<vmem>>, vector<1x64xf32>
      %41 = vector.broadcast %40 : vector<1x64xf32> to vector<8x64xf32>
      %42 = arith.mulf %39, %41 : vector<8x64xf32>
      %c0_20 = arith.constant 0 : index
      %c0_21 = arith.constant 0 : index
      %43 = vector.load %arg6[%c0_20, %c0_21] : memref<1x64xf32, #tpu.memory_space<vmem>>, vector<1x64xf32>
      %44 = vector.broadcast %43 : vector<1x64xf32> to vector<8x64xf32>
      %45 = arith.addf %42, %44 : vector<8x64xf32>
      %cst_22 = arith.constant 0.000000e+00 : f32
      %46 = vector.broadcast %cst_22 : f32 to vector<8x64xf32>
      %47 = arith.maximumf %45, %46 : vector<8x64xf32>
      %c0_23 = arith.constant 0 : index
      %c0_24 = arith.constant 0 : index
      %48 = vector.load %arg7[%c0_23, %c0_24] : memref<64x128xf32, #tpu.memory_space<vmem>>, vector<64x128xf32>
      %cst_25 = arith.constant dense<0.000000e+00> : vector<8x128xf32>
      %49 = tpu.matmul %47, %48, %cst_25 {dimension_numbers = #tpu.dot_dimension_numbers<[1], [0], [0], [1], [0, 0, 1, 1], [], []>} : vector<8x64xf32>, vector<64x128xf32>, vector<8x128xf32> -> vector<8x128xf32>
      %c0_26 = arith.constant 0 : index
      %c0_27 = arith.constant 0 : index
      %50 = vector.load %arg8[%c0_26, %c0_27] : memref<1x128xf32, #tpu.memory_space<vmem>>, vector<1x128xf32>
      %51 = vector.broadcast %50 : vector<1x128xf32> to vector<8x128xf32>
      %52 = arith.addf %49, %51 : vector<8x128xf32>
      %c0_28 = arith.constant 0 : index
      %c0_29 = arith.constant 0 : index
      %53 = vector.load %arg9[%c0_28, %c0_29] : memref<8x128xf32, #tpu.memory_space<vmem>>, vector<8x128xf32>
      tpu.vector_store %arg9[%c0_28, %c0_29], %52 {strides = array<i32>} : memref<8x128xf32, #tpu.memory_space<vmem>>, vector<8x128xf32>,
    } else {
    }
    return
  }
  func.func @transform_0(%arg0: i32, %arg1: i32) -> (i32, i32) {
    %c0_i32 = arith.constant 0 : i32
    %c0_i32_0 = arith.constant 0 : i32
    return %arg1, %c0_i32 : i32, i32
  }
  func.func @transform_1(%arg0: i32, %arg1: i32) -> (i32, i32) {
    %c0_i32 = arith.constant 0 : i32
    %c0_i32_0 = arith.constant 0 : i32
    %c0_i32_1 = arith.constant 0 : i32
    return %c0_i32, %c0_i32_0 : i32, i32
  }
  func.func @transform_2(%arg0: i32, %arg1: i32) -> (i32, i32) {
    %c0_i32 = arith.constant 0 : i32
    %c0_i32_0 = arith.constant 0 : i32
    %c0_i32_1 = arith.constant 0 : i32
    return %c0_i32, %c0_i32_0 : i32, i32
  }
  func.func @transform_3(%arg0: i32, %arg1: i32) -> (i32, i32) {
    %c0_i32 = arith.constant 0 : i32
    %c0_i32_0 = arith.constant 0 : i32
    %c0_i32_1 = arith.constant 0 : i32
    return %c0_i32, %c0_i32_0 : i32, i32
  }
  func.func @transform_4(%arg0: i32, %arg1: i32) -> (i32, i32) {
    %c0_i32 = arith.constant 0 : i32
    %c0_i32_0 = arith.constant 0 : i32
    %c0_i32_1 = arith.constant 0 : i32
    return %c0_i32, %c0_i32_0 : i32, i32
  }
  func.func @transform_5(%arg0: i32, %arg1: i32) -> (i32, i32) {
    %c0_i32 = arith.constant 0 : i32
    %c0_i32_0 = arith.constant 0 : i32
    %c0_i32_1 = arith.constant 0 : i32
    return %c0_i32, %c0_i32_0 : i32, i32
  }
  func.func @transform_6(%arg0: i32, %arg1: i32) -> (i32, i32) {
    %c0_i32 = arith.constant 0 : i32
    %c0_i32_0 = arith.constant 0 : i32
    %c0_i32_1 = arith.constant 0 : i32
    return %c0_i32, %c0_i32_0 : i32, i32
  }
  func.func @transform_7(%arg0: i32, %arg1: i32) -> (i32, i32) {
    %c0_i32 = arith.constant 0 : i32
    %c0_i32_0 = arith.constant 0 : i32
    return %arg1, %c0_i32 : i32, i32
  }
}

</mosaic_0001>

<llo_original>
// kernel: tpu_custom_call.1
$region0: #{tpu_custom_call.1}
  #allocation0 [shape = 'u32[]', space=smem, size = 0x4, offset = 0x4, fixed_abs, tag = 'smem constant byte address 0x4 - core index']
  #allocation1 [shape = 'u32[144,128]{1,0:T(1,128)}', space=vmem, size = 0x12000, scoped, tag = 'internal scratch']
  #allocation2 [shape = 'f32[1,64]{1,0:T(1,128)}', space=vmem, size = 0x200, scoped, tag = 'scratch operand']
  #allocation3 [shape = 'f32[1,64]{1,0:T(1,128)}', space=vmem, size = 0x200, scoped, tag = 'scratch operand']
  %s0 = inlined_call_operand.hbm [shape: f32[8,128], index: 0, kind: input, shape index: {}]
  %s1 = inlined_call_operand.hbm [shape: f32[128,128], index: 1, kind: input, shape index: {}]
  %s2 = inlined_call_operand.vmem [shape: f32[1,128], index: 2, kind: input, shape index: {}]
  %s3 = inlined_call_operand.vmem [shape: f32[1,64], index: 3, kind: input, shape index: {}]
  %s4 = inlined_call_operand.vmem [shape: f32[1,64], index: 4, kind: input, shape index: {}]
  %s5 = inlined_call_operand.hbm [shape: f32[64,128], index: 5, kind: input, shape index: {}]
  %s6 = inlined_call_operand.vmem [shape: f32[1,128], index: 6, kind: input, shape index: {}]
  %s7 = inlined_call_operand.hbm [shape: f32[8,128], index: 7, kind: output, shape index: {}]
  %s8 = sld [smem:[#allocation0]]
  $region85: #{tpu_custom_call.1} parent=0
    _
  %s10 = ssub.s32 1, %s8
  %s11 = scalar_select 0, %s10, %s8
  $region1: #{tpu_custom_call.1} parent=0
    #allocation4 [shape = 'u8[4096]{0}', space=vmem, size = 0x1000, scoped, tag = 'input window, operand 0, single buffered']
    #allocation5 [shape = 's32[2]{0}', space=sflag, size = 0x8, scoped, tag = 'scoped memory for tpu_custom_call.1']
    #allocation6 [shape = 's32[2]{0}', space=sflag, size = 0x8, scoped, tag = 'scoped memory for tpu_custom_call.1']
    #allocation7 [shape = 'u8[65536]{0}', space=vmem, size = 0x10000, scoped, tag = 'input window, operand 1, single buffered']
    #allocation8 [shape = 's32[1]{0}', space=sflag, size = 0x4, scoped, tag = 'scoped memory for tpu_custom_call.1']
    #allocation9 [shape = 'u8[32768]{0}', space=vmem, size = 0x8000, scoped, tag = 'input window, operand 5, single buffered']
    #allocation10 [shape = 'u8[4096]{0}', space=vmem, size = 0x1000, scoped, tag = 'output window, operand 0, single buffered']
    %12 = vsyncpa [#allocation5], 0
    %13 = vsyncpa [#allocation8], 0
    %14 = vsyncpa [#allocation6], 0
    loop: start=0, step=1, limit=4
    $region2: #{tpu_custom_call.1} parent=1 // loop_pre_header
      _
    $region3: #{tpu_custom_call.1} parent=1 // loop_header
      %s16 = sphi 0, %s20
      %p17 = scmp.ge.s32.totalorder %s16, 4
      %s23 = sphi 0, %s35
      %s24 = sphi 0, %s31
      %s25 = sphi 0, %s23
      %s26 = sphi 0, %s24
      %s27 = sphi 0, %s25
      %s28 = sphi 0, %s26
      %s38 = sphi 0, %s40
      %s41 = sphi 0, %s38
      %s42 = sphi 0, %s41
      %s58 = sphi 0, %s42
      %s62 = sphi 0, %s62
      %s64 = sphi 0, %s62
      %s65 = sphi 0, %s64
      %s79 = sphi 0, %s65
      %s83 = sphi 0, %s83
      %s85 = sphi 0, %s83
      %s86 = sphi 0, %s85
      %s100 = sphi 0, %s86
      %s104 = sphi 0, %s104
      %s106 = sphi 0, %s104
      %s107 = sphi 0, %s106
      %s121 = sphi 0, %s107
      %s125 = sphi 0, %s125
      %s127 = sphi 0, %s125
      %s128 = sphi 0, %s127
      %s142 = sphi 0, %s128
      %s146 = sphi 0, %s146
      %s148 = sphi 0, %s146
      %s149 = sphi 0, %s148
      %s163 = sphi 0, %s149
      %s167 = sphi 0, %s167
      %s169 = sphi 0, %s167
      %s170 = sphi 0, %s169
      %s184 = sphi 0, %s170
      %s190 = sphi 0, %s192
      %s193 = sphi 0, %s190
      %s194 = sphi 0, %s193
      %s210 = sphi 0, %s194
    $region4: #{tpu_custom_call.1} parent=1 // loop_header_branch
      %19 = sbr.rel (%p17) target = $region8
    $region5: #{tpu_custom_call.1} parent=1 // loop_body
      %s21 = ssub.s32 %s16, 1
      %s22 = ssub.s32 %s16, 2
      %s29 = sadd.s32 1, %s24
      %p30 = scmp.ge.s32.totalorder %s29, 1
      %s31 = scalar_select %p30, 0, %s29
      %s32 = sadd.s32 1, %s23
      %s33 = scalar_select %p30, %s32, %s23
      %p34 = scmp.ge.s32.totalorder %s33, 2
      %s35 = scalar_select %p34, 0, %s33
      %s36 = ssub.s32 %s24, %s31
      %p37 = scmp.eq.s32.totalorder %s36, 0
      %s39 = sadd.s32 %s38, 1
      %s40 = scalar_select %p37, %s38, %s39
      %p43 = pneg %p37
      %p44 = scmp.eq.s32.totalorder %s16, 1
      %p45 = por %p43, %p44
      %p46 = scmp.ne.s32.totalorder %s38, %s41
      %p47 = scmp.eq.s32.totalorder %s16, 0
      %p48 = por %p46, %p47
      %p49 = scmp.ne.s32.totalorder %s38, %s41
      %p50 = scmp.eq.s32.totalorder %s21, 1
      %p51 = por %p49, %p50
      %p52 = scmp.ne.s32.totalorder %s41, %s42
      %p53 = scmp.eq.s32.totalorder %s21, 0
      %p54 = por %p52, %p53
      %p55 = scmp.ne.s32.totalorder %s41, %s42
      %p56 = scmp.eq.s32.totalorder %s22, 1
      %p57 = por %p55, %p56
      %p59 = scmp.ne.s32.totalorder %s42, %s58
      %p60 = scmp.eq.s32.totalorder %s22, 0
      %p61 = por %p59, %p60
      %s63 = sadd.s32 %s62, 1
      %p66 = scmp.eq.s32.totalorder %s16, 1
      %p67 = scmp.ne.s32.totalorder %s62, %s64
      %p68 = scmp.eq.s32.totalorder %s16, 0
      %p69 = por %p67, %p68
      %p70 = scmp.ne.s32.totalorder %s62, %s64
      %p71 = scmp.eq.s32.totalorder %s21, 1
      %p72 = por %p70, %p71
      %p73 = scmp.ne.s32.totalorder %s64, %s65
      %p74 = scmp.eq.s32.totalorder %s21, 0
      %p75 = por %p73, %p74
      %p76 = scmp.ne.s32.totalorder %s64, %s65
      %p77 = scmp.eq.s32.totalorder %s22, 1
      %p78 = por %p76, %p77
      %p80 = scmp.ne.s32.totalorder %s65, %s79
      %p81 = scmp.eq.s32.totalorder %s22, 0
      %p82 = por %p80, %p81
      %s84 = sadd.s32 %s83, 1
      %p87 = scmp.eq.s32.totalorder %s16, 1
      %p88 = scmp.ne.s32.totalorder %s83, %s85
      %p89 = scmp.eq.s32.totalorder %s16, 0
      %p90 = por %p88, %p89
      %p91 = scmp.ne.s32.totalorder %s83, %s85
      %p92 = scmp.eq.s32.totalorder %s21, 1
      %p93 = por %p91, %p92
      %p94 = scmp.ne.s32.totalorder %s85, %s86
      %p95 = scmp.eq.s32.totalorder %s21, 0
      %p96 = por %p94, %p95
      %p97 = scmp.ne.s32.totalorder %s85, %s86
      %p98 = scmp.eq.s32.totalorder %s22, 1
      %p99 = por %p97, %p98
      %p101 = scmp.ne.s32.totalorder %s86, %s100
      %p102 = scmp.eq.s32.totalorder %s22, 0
      %p103 = por %p101, %p102
      %s105 = sadd.s32 %s104, 1
      %p108 = scmp.eq.s32.totalorder %s16, 1
      %p109 = scmp.ne.s32.totalorder %s104, %s106
      %p110 = scmp.eq.s32.totalorder %s16, 0
      %p111 = por %p109, %p110
      %p112 = scmp.ne.s32.totalorder %s104, %s106
      %p113 = scmp.eq.s32.totalorder %s21, 1
      %p114 = por %p112, %p113
      %p115 = scmp.ne.s32.totalorder %s106, %s107
      %p116 = scmp.eq.s32.totalorder %s21, 0
      %p117 = por %p115, %p116
      %p118 = scmp.ne.s32.totalorder %s106, %s107
      %p119 = scmp.eq.s32.totalorder %s22, 1
      %p120 = por %p118, %p119
      %p122 = scmp.ne.s32.totalorder %s107, %s121
      %p123 = scmp.eq.s32.totalorder %s22, 0
      %p124 = por %p122, %p123
      %s126 = sadd.s32 %s125, 1
      %p129 = scmp.eq.s32.totalorder %s16, 1
      %p130 = scmp.ne.s32.totalorder %s125, %s127
      %p131 = scmp.eq.s32.totalorder %s16, 0
      %p132 = por %p130, %p131
      %p133 = scmp.ne.s32.totalorder %s125, %s127
      %p134 = scmp.eq.s32.totalorder %s21, 1
      %p135 = por %p133, %p134
      %p136 = scmp.ne.s32.totalorder %s127, %s128
      %p137 = scmp.eq.s32.totalorder %s21, 0
      %p138 = por %p136, %p137
      %p139 = scmp.ne.s32.totalorder %s127, %s128
      %p140 = scmp.eq.s32.totalorder %s22, 1
      %p141 = por %p139, %p140
      %p143 = scmp.ne.s32.totalorder %s128, %s142
      %p144 = scmp.eq.s32.totalorder %s22, 0
      %p145 = por %p143, %p144
      %s147 = sadd.s32 %s146, 1
      %p150 = scmp.eq.s32.totalorder %s16, 1
      %p151 = scmp.ne.s32.totalorder %s146, %s148
      %p152 = scmp.eq.s32.totalorder %s16, 0
      %p153 = por %p151, %p152
      %p154 = scmp.ne.s32.totalorder %s146, %s148
      %p155 = scmp.eq.s32.totalorder %s21, 1
      %p156 = por %p154, %p155
      %p157 = scmp.ne.s32.totalorder %s148, %s149
      %p158 = scmp.eq.s32.totalorder %s21, 0
      %p159 = por %p157, %p158
      %p160 = scmp.ne.s32.totalorder %s148, %s149
      %p161 = scmp.eq.s32.totalorder %s22, 1
      %p162 = por %p160, %p161
      %p164 = scmp.ne.s32.totalorder %s149, %s163
      %p165 = scmp.eq.s32.totalorder %s22, 0
      %p166 = por %p164, %p165
      %s168 = sadd.s32 %s167, 1
      %p171 = scmp.eq.s32.totalorder %s16, 1
      %p172 = scmp.ne.s32.totalorder %s167, %s169
      %p173 = scmp.eq.s32.totalorder %s16, 0
      %p174 = por %p172, %p173
      %p175 = scmp.ne.s32.totalorder %s167, %s169
      %p176 = scmp.eq.s32.totalorder %s21, 1
      %p177 = por %p175, %p176
      %p178 = scmp.ne.s32.totalorder %s169, %s170
      %p179 = scmp.eq.s32.totalorder %s21, 0
      %p180 = por %p178, %p179
      %p181 = scmp.ne.s32.totalorder %s169, %s170
      %p182 = scmp.eq.s32.totalorder %s22, 1
      %p183 = por %p181, %p182
      %p185 = scmp.ne.s32.totalorder %s170, %s184
      %p186 = scmp.eq.s32.totalorder %s22, 0
      %p187 = por %p185, %p186
      %s188 = ssub.s32 %s24, %s31
      %p189 = scmp.eq.s32.totalorder %s188, 0
      %s191 = sadd.s32 %s190, 1
      %s192 = scalar_select %p189, %s190, %s191
      %p195 = pneg %p189
      %p196 = scmp.eq.s32.totalorder %s16, 1
      %p197 = por %p195, %p196
      %p198 = scmp.ne.s32.totalorder %s190, %s193
      %p199 = scmp.eq.s32.totalorder %s16, 0
      %p200 = por %p198, %p199
      %p201 = scmp.ne.s32.totalorder %s190, %s193
      %p202 = scmp.eq.s32.totalorder %s21, 1
      %p203 = por %p201, %p202
      %p204 = scmp.ne.s32.totalorder %s193, %s194
      %p205 = scmp.eq.s32.totalorder %s21, 0
      %p206 = por %p204, %p205
      %p207 = scmp.ne.s32.totalorder %s193, %s194
      %p208 = scmp.eq.s32.totalorder %s22, 1
      %p209 = por %p207, %p208
      %p211 = scmp.ne.s32.totalorder %s194, %s210
      %p212 = scmp.eq.s32.totalorder %s22, 0
      %p213 = por %p211, %p212
      %p214 = scmp.le.s32.totalorder 1, %s16
      %p215 = scmp.lt.s32.totalorder %s16, 3
      %p216 = pnand %p214, %p215
      %p217 = pneg %p216
      // Predicated region
      $region9: #{tpu_custom_call.1} parent=5 // pred_check
        _
      $region10: #{tpu_custom_call.1} parent=5 // pred_check_branch
        %219 = sbr.rel (%p216) target = $region12
      $region11: #{tpu_custom_call.1} parent=5 // pred_region
        %s220 = ssub.s32 %s16, 1
        // Predicated region
        $region13: #{tpu_custom_call.1} parent=11 // pred_check
          %p221 = pneg %p54
        $region14: #{tpu_custom_call.1} parent=11 // pred_check_branch
          %223 = sbr.rel (%p221) target = $region16
        $region15: #{tpu_custom_call.1} parent=11 // pred_region
          %s225 = ssub.s32 128, 128
          %226 = vsyncadd [#allocation5], %s225
          %s227 = smul.addr %s26, 128
          %s228 = scalar_lea.hbm %s0, %s227
          %s230 = sshll.u32 [#allocation4], 4
          %s231 = int_to_ptr.vmem [resolvable:$true] %s230
          %233 = dma.hbm_to_vmem [thread:$0]  %s228, 128, %s231, [#allocation5]
        $region16: #{tpu_custom_call.1} parent=11 // pred_fallthru
          _
        // Predicated region
        $region17: #{tpu_custom_call.1} parent=11 // pred_check
          %p234 = pneg %p75
        $region18: #{tpu_custom_call.1} parent=11 // pred_check_branch
          %236 = sbr.rel (%p234) target = $region20
        $region19: #{tpu_custom_call.1} parent=11 // pred_region
          %s238 = ssub.s32 2048, 2048
          %239 = vsyncadd [#allocation8], %s238
          %s240 = sshll.u32 [#allocation7], 4
          %s241 = int_to_ptr.vmem [resolvable:$true] %s240
          %246 = dma.hbm_to_vmem [thread:$0]  %s1, 2048, %s241, [#allocation8], 128, 128, 8
        $region20: #{tpu_custom_call.1} parent=11 // pred_fallthru
          _
        // Predicated region
        $region21: #{tpu_custom_call.1} parent=11 // pred_check
          %p247 = pneg %p96
        $region22: #{tpu_custom_call.1} parent=11 // pred_check_branch
          %249 = sbr.rel (%p247) target = $region24
        $region23: #{tpu_custom_call.1} parent=11 // pred_region
          _
        $region24: #{tpu_custom_call.1} parent=11 // pred_fallthru
          _
        // Predicated region
        $region25: #{tpu_custom_call.1} parent=11 // pred_check
          %p250 = pneg %p117
        $region26: #{tpu_custom_call.1} parent=11 // pred_check_branch
          %252 = sbr.rel (%p250) target = $region28
        $region27: #{tpu_custom_call.1} parent=11 // pred_region
          _
        $region28: #{tpu_custom_call.1} parent=11 // pred_fallthru
          _
        // Predicated region
        $region29: #{tpu_custom_call.1} parent=11 // pred_check
          %p253 = pneg %p138
        $region30: #{tpu_custom_call.1} parent=11 // pred_check_branch
          %255 = sbr.rel (%p253) target = $region32
        $region31: #{tpu_custom_call.1} parent=11 // pred_region
          _
        $region32: #{tpu_custom_call.1} parent=11 // pred_fallthru
          _
        // Predicated region
        $region33: #{tpu_custom_call.1} parent=11 // pred_check
          %p256 = pneg %p159
        $region34: #{tpu_custom_call.1} parent=11 // pred_check_branch
          %258 = sbr.rel (%p256) target = $region36
        $region35: #{tpu_custom_call.1} parent=11 // pred_region
          %s260 = ssub.s32 1024, 1024
          %261 = vsyncadd [#allocation8], %s260
          %s262 = sshll.u32 [#allocation9], 4
          %s263 = int_to_ptr.vmem [resolvable:$true] %s262
          %268 = dma.hbm_to_vmem [thread:$0]  %s5, 1024, %s263, [#allocation8], 128, 128, 8
        $region36: #{tpu_custom_call.1} parent=11 // pred_fallthru
          _
        // Predicated region
        $region37: #{tpu_custom_call.1} parent=11 // pred_check
          %p269 = pneg %p180
        $region38: #{tpu_custom_call.1} parent=11 // pred_check_branch
          %271 = sbr.rel (%p269) target = $region40
        $region39: #{tpu_custom_call.1} parent=11 // pred_region
          _
        $region40: #{tpu_custom_call.1} parent=11 // pred_fallthru
          _
      $region12: #{tpu_custom_call.1} parent=5 // pred_fallthru
        _
      %p272 = scmp.lt.s32.totalorder %s16, 2
      // Predicated region
      $region41: #{tpu_custom_call.1} parent=5 // pred_check
        %p273 = pneg %p272
      $region42: #{tpu_custom_call.1} parent=5 // pred_check_branch
        %275 = sbr.rel (%p273) target = $region44
      $region43: #{tpu_custom_call.1} parent=5 // pred_region
        _
      $region44: #{tpu_custom_call.1} parent=5 // pred_fallthru
        _
      %p276 = scmp.le.s32.totalorder 1, %s16
      %p277 = scmp.lt.s32.totalorder %s16, 3
      %p278 = pnand %p276, %p277
      %p279 = pneg %p278
      // Predicated region
      $region45: #{tpu_custom_call.1} parent=5 // pred_check
        _
      $region46: #{tpu_custom_call.1} parent=5 // pred_check_branch
        %281 = sbr.rel (%p278) target = $region48
      $region47: #{tpu_custom_call.1} parent=5 // pred_region
        %s282 = ssub.s32 %s16, 1
        // Predicated region
        $region49: #{tpu_custom_call.1} parent=47 // pred_check
          %p283 = pneg %p54
        $region50: #{tpu_custom_call.1} parent=47 // pred_check_branch
          %285 = sbr.rel (%p283) target = $region52
        $region51: #{tpu_custom_call.1} parent=47 // pred_region
          %286 = dma.done [#allocation5], 128
        $region52: #{tpu_custom_call.1} parent=47 // pred_fallthru
          _
        // Predicated region
        $region53: #{tpu_custom_call.1} parent=47 // pred_check
          %p287 = pneg %p75
        $region54: #{tpu_custom_call.1} parent=47 // pred_check_branch
          %289 = sbr.rel (%p287) target = $region56
        $region55: #{tpu_custom_call.1} parent=47 // pred_region
          %290 = dma.done [#allocation8], 2048
        $region56: #{tpu_custom_call.1} parent=47 // pred_fallthru
          _
        // Predicated region
        $region57: #{tpu_custom_call.1} parent=47 // pred_check
          %p291 = pneg %p159
        $region58: #{tpu_custom_call.1} parent=47 // pred_check_branch
          %293 = sbr.rel (%p291) target = $region60
        $region59: #{tpu_custom_call.1} parent=47 // pred_region
          %294 = dma.done [#allocation8], 1024
        $region60: #{tpu_custom_call.1} parent=47 // pred_fallthru
          _
        %p295 = pneg %p54
        %p296 = pneg %p51
        %p297 = pneg %p75
        %p298 = pneg %p72
        %p299 = pneg %p96
        %p300 = pneg %p93
        %p301 = pneg %p117
        %p302 = pneg %p114
        %p303 = pneg %p138
        %p304 = pneg %p135
        %p305 = pneg %p159
        %p306 = pneg %p156
        %p307 = pneg %p180
        %p308 = pneg %p177
        %p309 = pneg %p206
        %p310 = pneg %p203
        %v311 = vld [vmem:[#allocation4] sm:$0xff]
        %v312 = vld [vmem:[#allocation7] sm:$0xff]
        %v313 = vld [vmem:[#allocation7 + $0x8] sm:$0xff]
        %v314 = vld [vmem:[#allocation7 + $0x10] sm:$0xff]
        %v315 = vld [vmem:[#allocation7 + $0x18] sm:$0xff]
        %v316 = vld [vmem:[#allocation7 + $0x20] sm:$0xff]
        %v317 = vld [vmem:[#allocation7 + $0x28] sm:$0xff]
        %v318 = vld [vmem:[#allocation7 + $0x30] sm:$0xff]
        %v319 = vld [vmem:[#allocation7 + $0x38] sm:$0xff]
        %v320 = vld [vmem:[#allocation7 + $0x40] sm:$0xff]
        %v321 = vld [vmem:[#allocation7 + $0x48] sm:$0xff]
        %v322 = vld [vmem:[#allocation7 + $0x50] sm:$0xff]
        %v323 = vld [vmem:[#allocation7 + $0x58] sm:$0xff]
        %v324 = vld [vmem:[#allocation7 + $0x60] sm:$0xff]
        %v325 = vld [vmem:[#allocation7 + $0x68] sm:$0xff]
        %v326 = vld [vmem:[#allocation7 + $0x70] sm:$0xff]
        %v327 = vld [vmem:[#allocation7 + $0x78] sm:$0xff]
        %v328 = vld [vmem:[%s2] sm:$0x1]
        %v330 = vlaneseq
        %v331 = vshrl.u32 %v330, 7
        %v332 = vsub.s32 0, %v331
        %v333 = vrot.slane %v328, %v332
        %335 = vmatprep.subr.mxu0 0.0
        %336 = vmatpush1.msra.mxu0 %v312
        %337 = vmatprep.subr.mxu0 0.0
        %338 = vmatpush1.msra.mxu0 %v313
        %339 = vmatprep.subr.mxu0 0.0
        %340 = vmatpush1.msra.mxu0 %v314
        %341 = vmatprep.subr.mxu0 0.0
        %342 = vmatpush1.msra.mxu0 %v315
        %343 = vmatprep.subr.mxu0 0.0
        %344 = vmatpush1.msra.mxu0 %v316
        %345 = vmatprep.subr.mxu0 0.0
        %346 = vmatpush1.msra.mxu0 %v317
        %347 = vmatprep.subr.mxu0 0.0
        %348 = vmatpush1.msra.mxu0 %v318
        %349 = vmatprep.subr.mxu0 0.0
        %350 = vmatpush1.msra.mxu0 %v319
        %351 = vmatprep.subr.mxu0 0.0
        %352 = vmatpush1.msra.mxu0 %v320
        %353 = vmatprep.subr.mxu0 0.0
        %354 = vmatpush1.msra.mxu0 %v321
        %355 = vmatprep.subr.mxu0 0.0
        %356 = vmatpush1.msra.mxu0 %v322
        %357 = vmatprep.subr.mxu0 0.0
        %358 = vmatpush1.msra.mxu0 %v323
        %359 = vmatprep.subr.mxu0 0.0
        %360 = vmatpush1.msra.mxu0 %v324
        %361 = vmatprep.subr.mxu0 0.0
        %362 = vmatpush1.msra.mxu0 %v325
        %363 = vmatprep.subr.mxu0 0.0
        %364 = vmatpush1.msra.mxu0 %v326
        %365 = vmatprep.subr.mxu0 0.0
        %366 = vmatpush1.msra.mxu0 %v327
        %367 = vmatprep.subr.mxu0 0.0
        %368 = vmatpush1.msra.mxu0 0.0
        %369 = vmatprep.subr.mxu0 0.0
        %370 = vmatpush1.msra.mxu0 0.0
        %371 = vmatprep.subr.mxu0 0.0
        %372 = vmatpush1.msra.mxu0 0.0
        %373 = vmatprep.subr.mxu0 0.0
        %374 = vmatpush1.msra.mxu0 0.0
        %375 = vmatprep.subr.mxu0 0.0
        %376 = vmatpush1.msra.mxu0 0.0
        %377 = vmatprep.subr.mxu0 0.0
        %378 = vmatpush1.msra.mxu0 0.0
        %379 = vmatprep.subr.mxu0 0.0
        %380 = vmatpush1.msra.mxu0 0.0
        %381 = vmatprep.subr.mxu0 0.0
        %382 = vmatpush1.msra.mxu0 0.0
        %383 = vmatprep.subr.mxu0 0.0
        %384 = vmatpush1.msra.mxu0 0.0
        %385 = vmatprep.subr.mxu0 0.0
        %386 = vmatpush1.msra.mxu0 0.0
        %387 = vmatprep.subr.mxu0 0.0
        %388 = vmatpush1.msra.mxu0 0.0
        %389 = vmatprep.subr.mxu0 0.0
        %390 = vmatpush1.msra.mxu0 0.0
        %391 = vmatprep.subr.mxu0 0.0
        %392 = vmatpush1.msra.mxu0 0.0
        %393 = vmatprep.subr.mxu0 0.0
        %394 = vmatpush1.msra.mxu0 0.0
        %395 = vmatprep.subr.mxu0 0.0
        %396 = vmatpush1.msra.mxu0 0.0
        %397 = vmatprep.subr.mxu0 0.0
        %398 = vmatpush1.msra.mxu0 0.0
        %399 = vmatprep.mubr.f32.mxu0 0.0
        %400 = vmatmul.mubr.f32.gmra.mrb[0].mxu0 %v311
        %v401 = vpop.f32.mrb[0].mxu0
        %v402 = vadd.f32 %v333, %v401
        %v403 = vpop.f32.mrb[0].mxu0
        %404 = vdwg.mxu0
        %v405 = vxor.u32 %v402, 2147483648
        %v406 = vmul.f32 %v405, 1.442695
        %v407 = vpow.pop %v406
        %v408 = vadd.f32 %v407, 1.0
        %v409 = vrcp.pop %v408
        %v410 = vmul.f32 1.0, %v409
        %412 = vrot.lane.b32.xlu0 %v410, 64
        %v413 = vpop.permute.xlu0 %412
        %v415 = vmul.f32 %v402, %v413
        %p416 = scmp.eq.s32.totalorder %s25, 0
        %p417 = scmp.eq.s32.totalorder %s26, 0
        %p418 = pnand %p416, %p417
        %p419 = pneg %p418
        // Predicated region
        $region61: #{tpu_custom_call.1} parent=47 // pred_check
          _
        $region62: #{tpu_custom_call.1} parent=47 // pred_check_branch
          %421 = sbr.rel (%p418) target = $region64
        $region63: #{tpu_custom_call.1} parent=47 // pred_region
          %vm422 = vcmask 516096
          %423 = vst.msk [vmem:[#allocation2] sm:$0x1] %vm422, 0.0
          %424 = vst.msk [vmem:[#allocation3] sm:$0x1] %vm422, 0.0
        $region64: #{tpu_custom_call.1} parent=47 // pred_fallthru
          _
        // Predicated region
        $region65: #{tpu_custom_call.1} parent=47 // pred_check
          %p425 = pneg %p416
        $region66: #{tpu_custom_call.1} parent=47 // pred_check_branch
          %427 = sbr.rel (%p425) target = $region68
        $region67: #{tpu_custom_call.1} parent=47 // pred_region
          %s428 = smul.u32 %s26, 8
          %v429 = vlaneseq
          %v430 = vshrl.u32 %v429, 7
          %v431 = vstv %s428
          %v432 = vadd.s32 %v431, %v430
          %vm433 = vcmp.lt.s32.totalorder %v432, 8
          %v434 = vsel %vm433, %v415, 0.0
          %v435 = vld [vmem:[#allocation2] sm:$0x1]
          %vm436 = vcmask 523264
          %v437 = vsel %vm436, %v434, 0.0
          %v438 = vrot.slane %v437, 4
          %v439 = vadd.f32 %v437, %v438
          %v440 = vrot.slane %v439, 2
          %v441 = vadd.f32 %v439, %v440
          %v442 = vrot.slane %v441, 1
          %v443 = vadd.f32 %v441, %v442
          %v444 = vadd.f32 %v435, %v443
          %vm445 = vcmask 516096
          %446 = vst.msk [vmem:[#allocation2] sm:$0x1] %vm445, %v444
          %v447 = vld [vmem:[#allocation3] sm:$0x1]
          %v448 = vmul.f32 %v434, %v434
          %v449 = vsel %vm436, %v448, 0.0
          %v450 = vrot.slane %v449, 4
          %v451 = vadd.f32 %v449, %v450
          %v452 = vrot.slane %v451, 2
          %v453 = vadd.f32 %v451, %v452
          %v454 = vrot.slane %v453, 1
          %v455 = vadd.f32 %v453, %v454
          %v456 = vadd.f32 %v447, %v455
          %457 = vst.msk [vmem:[#allocation3] sm:$0x1] %vm445, %v456
          %458 = vst [vmem:[#allocation10] sm:$0xff] 0.0
        $region68: #{tpu_custom_call.1} parent=47 // pred_fallthru
          _
        %p459 = scmp.eq.s32.totalorder %s25, 1
        // Predicated region
        $region69: #{tpu_custom_call.1} parent=47 // pred_check
          %p460 = pneg %p459
        $region70: #{tpu_custom_call.1} parent=47 // pred_check_branch
          %462 = sbr.rel (%p460) target = $region72
        $region71: #{tpu_custom_call.1} parent=47 // pred_region
          %v463 = vld [vmem:[#allocation2] sm:$0x1]
          %v464 = vmul.f32 %v463, 0.125
          %v465 = vld [vmem:[#allocation3] sm:$0x1]
          %v466 = vmul.f32 %v465, 0.125
          %v467 = vmul.f32 %v464, %v464
          %v468 = vsub.f32 %v466, %v467
          %v470 = vlaneseq
          %v471 = vshrl.u32 %v470, 7
          %v472 = vsub.s32 0, %v471
          %v473 = vrot.slane %v464, %v472
          %v475 = vsub.f32 %v415, %v473
          %v476 = vadd.f32 %v468, 1e-05
          %v477 = vrsqrt.pop %v476
          %v479 = vlaneseq
          %v480 = vshrl.u32 %v479, 7
          %v481 = vsub.s32 0, %v480
          %v482 = vrot.slane %v477, %v481
          %v484 = vmul.f32 %v475, %v482
          %v485 = vld [vmem:[%s3] sm:$0x1]
          %v487 = vlaneseq
          %v488 = vshrl.u32 %v487, 7
          %v489 = vsub.s32 0, %v488
          %v490 = vrot.slane %v485, %v489
          %v492 = vmul.f32 %v484, %v490
          %v493 = vld [vmem:[%s4] sm:$0x1]
          %v495 = vlaneseq
          %v496 = vshrl.u32 %v495, 7
          %v497 = vsub.s32 0, %v496
          %v498 = vrot.slane %v493, %v497
          %v500 = vadd.f32 %v492, %v498
          %v501 = vmax.f32 %v500, 0.0
          %v502 = vld [vmem:[#allocation9] sm:$0xff]
          %v503 = vld [vmem:[#allocation9 + $0x8] sm:$0xff]
          %v504 = vld [vmem:[#allocation9 + $0x10] sm:$0xff]
          %v505 = vld [vmem:[#allocation9 + $0x18] sm:$0xff]
          %v506 = vld [vmem:[#allocation9 + $0x20] sm:$0xff]
          %v507 = vld [vmem:[#allocation9 + $0x28] sm:$0xff]
          %v508 = vld [vmem:[#allocation9 + $0x30] sm:$0xff]
          %v509 = vld [vmem:[#allocation9 + $0x38] sm:$0xff]
          %v510 = vld [vmem:[%s6] sm:$0x1]
          %v512 = vlaneseq
          %v513 = vshrl.u32 %v512, 7
          %v514 = vsub.s32 0, %v513
          %v515 = vrot.slane %v510, %v514
          %vm517 = vcmask 523264
          %v519 = vsel %vm517, %v501, 0
          %521 = vmatprep.subr.mxu0 0.0
          %522 = vmatpush1.msra.mxu0 %v502
          %523 = vmatprep.subr.mxu0 0.0
          %524 = vmatpush1.msra.mxu0 %v503
          %525 = vmatprep.subr.mxu0 0.0
          %526 = vmatpush1.msra.mxu0 %v504
          %527 = vmatprep.subr.mxu0 0.0
          %528 = vmatpush1.msra.mxu0 %v505
          %529 = vmatprep.subr.mxu0 0.0
          %530 = vmatpush1.msra.mxu0 %v506
          %531 = vmatprep.subr.mxu0 0.0
          %532 = vmatpush1.msra.mxu0 %v507
          %533 = vmatprep.subr.mxu0 0.0
          %534 = vmatpush1.msra.mxu0 %v508
          %535 = vmatprep.subr.mxu0 0.0
          %536 = vmatpush1.msra.mxu0 %v509
          %537 = vmatprep.subr.mxu0 0.0
          %538 = vmatpush1.msra.mxu0 0.0
          %539 = vmatprep.subr.mxu0 0.0
          %540 = vmatpush1.msra.mxu0 0.0
          %541 = vmatprep.subr.mxu0 0.0
          %542 = vmatpush1.msra.mxu0 0.0
          %543 = vmatprep.subr.mxu0 0.0
          %544 = vmatpush1.msra.mxu0 0.0
          %545 = vmatprep.subr.mxu0 0.0
          %546 = vmatpush1.msra.mxu0 0.0
          %547 = vmatprep.subr.mxu0 0.0
          %548 = vmatpush1.msra.mxu0 0.0
          %549 = vmatprep.subr.mxu0 0.0
          %550 = vmatpush1.msra.mxu0 0.0
          %551 = vmatprep.subr.mxu0 0.0
          %552 = vmatpush1.msra.mxu0 0.0
          %553 = vmatprep.subr.mxu0 0.0
          %554 = vmatpush1.msra.mxu0 0.0
          %555 = vmatprep.subr.mxu0 0.0
          %556 = vmatpush1.msra.mxu0 0.0
          %557 = vmatprep.subr.mxu0 0.0
          %558 = vmatpush1.msra.mxu0 0.0
          %559 = vmatprep.subr.mxu0 0.0
          %560 = vmatpush1.msra.mxu0 0.0
          %561 = vmatprep.subr.mxu0 0.0
          %562 = vmatpush1.msra.mxu0 0.0
          %563 = vmatprep.subr.mxu0 0.0
          %564 = vmatpush1.msra.mxu0 0.0
          %565 = vmatprep.subr.mxu0 0.0
          %566 = vmatpush1.msra.mxu0 0.0
          %567 = vmatprep.subr.mxu0 0.0
          %568 = vmatpush1.msra.mxu0 0.0
          %569 = vmatprep.subr.mxu0 0.0
          %570 = vmatpush1.msra.mxu0 0.0
          %571 = vmatprep.subr.mxu0 0.0
          %572 = vmatpush1.msra.mxu0 0.0
          %573 = vmatprep.subr.mxu0 0.0
          %574 = vmatpush1.msra.mxu0 0.0
          %575 = vmatprep.subr.mxu0 0.0
          %576 = vmatpush1.msra.mxu0 0.0
          %577 = vmatprep.subr.mxu0 0.0
          %578 = vmatpush1.msra.mxu0 0.0
          %579 = vmatprep.subr.mxu0 0.0
          %580 = vmatpush1.msra.mxu0 0.0
          %581 = vmatprep.subr.mxu0 0.0
          %582 = vmatpush1.msra.mxu0 0.0
          %583 = vmatprep.subr.mxu0 0.0
          %584 = vmatpush1.msra.mxu0 0.0
          %585 = vmatprep.mubr.f32.mxu0 0.0
          %586 = vmatmul.mubr.f32.gmra.mrb[0].mxu0 %v519
          %v587 = vpop.f32.mrb[0].mxu0
          %v588 = vadd.f32 %v515, %v587
          %v589 = vpop.f32.mrb[0].mxu0
          %590 = vdwg.mxu0
          %591 = vst [vmem:[#allocation10] sm:$0xff] %v588
        $region72: #{tpu_custom_call.1} parent=47 // pred_fallthru
          _
        // Predicated region
        $region73: #{tpu_custom_call.1} parent=47 // pred_check
          %p592 = pneg %p203
        $region74: #{tpu_custom_call.1} parent=47 // pred_check_branch
          %594 = sbr.rel (%p592) target = $region76
        $region75: #{tpu_custom_call.1} parent=47 // pred_region
          %s596 = ssub.s32 128, 128
          %597 = vsyncadd [#allocation6], %s596
          %s598 = smul.addr %s26, 128
          %s599 = scalar_lea.hbm %s7, %s598
          %s601 = sshll.u32 [#allocation10], 4
          %s602 = int_to_ptr.vmem [resolvable:$true] %s601
          %604 = dma.vmem_to_hbm [thread:$0]  %s602, 128, %s599, [#allocation6]
        $region76: #{tpu_custom_call.1} parent=47 // pred_fallthru
          _
        // Predicated region
        $region77: #{tpu_custom_call.1} parent=47 // pred_check
          %p605 = pneg %p203
        $region78: #{tpu_custom_call.1} parent=47 // pred_check_branch
          %607 = sbr.rel (%p605) target = $region80
        $region79: #{tpu_custom_call.1} parent=47 // pred_region
          %608 = dma.done [#allocation6], 128
        $region80: #{tpu_custom_call.1} parent=47 // pred_fallthru
          _
      $region48: #{tpu_custom_call.1} parent=5 // pred_fallthru
        _
      %p609 = scmp.le.s32.totalorder 2, %s16
      // Predicated region
      $region81: #{tpu_custom_call.1} parent=5 // pred_check
        %p610 = pneg %p609
      $region82: #{tpu_custom_call.1} parent=5 // pred_check_branch
        %612 = sbr.rel (%p610) target = $region84
      $region83: #{tpu_custom_call.1} parent=5 // pred_region
        %s613 = ssub.s32 %s16, 2
      $region84: #{tpu_custom_call.1} parent=5 // pred_fallthru
        _
    $region6: #{tpu_custom_call.1} parent=1 // loop_footer
      %s20 = sadd.s32 1, %s16
    $region7: #{tpu_custom_call.1} parent=1 // loop_footer_branch
      %15 = sbr.rel target = $region3
    $region8: #{tpu_custom_call.1} parent=1 // loop_exit
      _
    %614 = vsyncpa [#allocation5], 1
    %s615 = scalar_lea.sflag [#allocation5], 1
    %616 = vsyncpa %s615, 1
    %617 = vsyncpa [#allocation8], 1
    %618 = vsyncpa [#allocation6], 1
    %s619 = scalar_lea.sflag [#allocation6], 1
    %620 = vsyncpa %s619, 1

</llo_original>
